<compile_context>
chip_gen: v6e
topology: v6e:2x2x1
jax: 0.10.0
libtpu: 0.0.40
codegen_flags: <defaults>
</compile_context>

<pallas_src>
import functools

import jax
import jax.numpy as jnp
from jax import lax
from jax.experimental import pallas as pl
from jax.experimental.pallas import tpu as pltpu


def _round_up(x, m):
    return (x + m - 1) // m * m


def dim_attention_kernel(x_ref, w_ref, b_ref, mask_ref, out_ref):
    # x_ref   : (TR, Hp)  input rows (native dtype; bf16 feeds the MXU directly)
    # w_ref   : (Hp, Hp)  Linear weight in torch (out, in) layout, consumed
    #                     directly (no transpose pass over HBM).
    # b_ref   : (1, Hp)   f32 bias; padded lanes hold -inf so they drop out of
    #                     the softmax.
    # mask_ref: (TR, 1)   int32, nonzero => fill whole row with -inf.
    # out_ref : (TR, Hp)  softmax over the last (lane-dense) dim.
    x = x_ref[...]
    w = w_ref[...]

    # sim[i, j] = sum_k x[i, k] * w[j, k]  ==  x @ W.T   (MXU, f32 accumulation)
    sim = lax.dot_general(x, w, (((1,), (1,)), ((), ())),
                          preferred_element_type=jnp.float32)
    sim = sim + b_ref[...]                       # -inf on padded lanes

    # masked_fill_(mask.unsqueeze(-1), -inf): broadcast (TR,1) over Hp lanes
    sim = jnp.where(mask_ref[...] != 0, -jnp.inf, sim)

    # Numerically-stable softmax over the last dim; an all -inf row yields NaN,
    # matching torch.nn.Softmax.
    mx = jnp.max(sim, axis=-1, keepdims=True)
    e = jnp.exp(sim - mx)
    denom = jnp.sum(e, axis=-1, keepdims=True)
    out_ref[...] = (e * pl.reciprocal(denom, approx=True)).astype(out_ref.dtype)


@functools.partial(jax.jit, static_argnames=("tr",))
def dim_attention(x, w, b, mask, *, tr=256):
    """x: (B,S,H); w: (H,H) torch Linear weight (out,in); b: (H,); mask: (B,S)."""
    B, S, H = x.shape
    R = B * S
    Hp = _round_up(H, 128)                    # lane-dense last dim
    tr_eff = min(tr, _round_up(R, 8))         # big row tiles, no absurd padding
    Rp = _round_up(R, tr_eff)

    # --- layout plumbing (done once in XLA, outside the kernel hot loop) -----
    x2 = jnp.pad(x.reshape(R, H), ((0, Rp - R), (0, Hp - H)))
    w_p = jnp.pad(w, ((0, Hp - H), (0, Hp - H)))              # zero pads: inert
    b_p = jnp.full((1, Hp), -jnp.inf, dtype=jnp.float32)
    b_p = b_p.at[0, :H].set(b.astype(jnp.float32))            # pad lanes -> -inf
    m2 = jnp.pad(mask.reshape(R), (0, Rp - R)).astype(jnp.int32).reshape(Rp, 1)

    grid = (Rp // tr_eff,)

    # Explicit VMEM budget: double-buffered x/out tiles + replicated W + bias
    # + mask, with headroom; clamped to the 64 MiB v7x per-core ceiling.
    bytes_per = 4
    need = 2 * bytes_per * (2 * tr_eff * Hp + Hp * Hp + Hp + tr_eff)
    vmem_limit = int(min(max(2 * need, 32 << 20), 64 << 20))

    out = pl.pallas_call(
        dim_attention_kernel,
        out_shape=jax.ShapeDtypeStruct((Rp, Hp), x.dtype),
        grid=grid,
        in_specs=[
            pl.BlockSpec((tr_eff, Hp), lambda i: (i, 0)),     # x rows
            pl.BlockSpec((Hp, Hp), lambda i: (0, 0)),         # W (replicated)
            pl.BlockSpec((1, Hp), lambda i: (0, 0)),          # bias (replicated)
            pl.BlockSpec((tr_eff, 1), lambda i: (i, 0)),      # row mask
        ],
        out_specs=pl.BlockSpec((tr_eff, Hp), lambda i: (i, 0)),
        compiler_params=pltpu.CompilerParams(
            dimension_semantics=("parallel",),
            vmem_limit_bytes=vmem_limit),
    )(x2, w_p, b_p, m2)
    return out[:R, :H].reshape(B, S, H)


def _reference(x, w, b, mask):
    """Pure-JAX reference mirroring the PyTorch forward."""
    sim = jnp.einsum("bsh,oh->bso", x, w) + b
    sim = jnp.where((mask != 0)[..., None], -jnp.inf, sim)
    return jax.nn.softmax(sim, axis=-1)


if __name__ == "__main__":
    B, S, H = 2, 8, 32

    key = jax.random.PRNGKey(0)
    kx, kw, kb, km = jax.random.split(key, 4)

    x = jax.random.normal(kx, (B, S, H), dtype=jnp.float32)
    # Deterministic "UniSimilarity" linear params (torch Linear shapes).
    w = jax.random.normal(kw, (H, H), dtype=jnp.float32) * (1.0 / jnp.sqrt(H))
    b = jax.random.normal(kb, (H,), dtype=jnp.float32) * 0.01
    # mask: (B, S); nonzero entries are masked (whole hidden row -> -inf).
    mask = (jax.random.uniform(km, (B, S)) < 0.25).astype(jnp.float32)

    out = dim_attention(x, w, b, mask)
    jax.block_until_ready(out)

    ref = _reference(x, w, b, mask)
    valid = (mask == 0)[..., None]        # fully-masked rows are NaN by design
    # approx reciprocal (EUP) -> slightly looser tolerance than exact divide
    ok = jnp.allclose(jnp.where(valid, out, 0.0),
                      jnp.where(valid, ref, 0.0), atol=2e-3, rtol=2e-3)
    assert bool(ok), "Pallas output mismatch vs. JAX reference"
    # masked rows normalize to NaN (matching torch), unmasked rows are finite
    assert bool(jnp.all(jnp.where(~valid, jnp.isnan(out), True)))
    assert bool(jnp.all(jnp.where(valid, jnp.isfinite(out), True)))

    print("KERNEL_OK")
</pallas_src>

<mosaic_0001>
module attributes {stable_mosaic.version = 11 : i64} {
  func.func @dim_attention_kernel(%arg0: i32, %arg1: memref<16x128xf32, #tpu.memory_space<vmem>>, %arg2: memref<128x128xf32, #tpu.memory_space<vmem>>, %arg3: memref<1x128xf32, #tpu.memory_space<vmem>>, %arg4: memref<16x1xi32, #tpu.memory_space<vmem>>, %arg5: memref<16x128xf32, #tpu.memory_space<vmem>>) attributes {dimension_semantics = [#tpu.dimension_semantics<parallel>], iteration_bounds = array<i64: 1>, scalar_prefetch = 0 : i64, scratch_operands = 0 : i64, tpu.core_type = #tpu.core_type<tc>, window_params = [{transform_indices = @transform_0, window_bounds = array<i64: 16, 128>}, {pipeline_mode = #tpu.pipeline_mode<synchronous>, transform_indices = @transform_1, window_bounds = array<i64: 128, 128>}, {pipeline_mode = #tpu.pipeline_mode<synchronous>, transform_indices = @transform_2, window_bounds = array<i64: 1, 128>}, {transform_indices = @transform_3, window_bounds = array<i64: 16, 1>}, {transform_indices = @transform_4, window_bounds = array<i64: 16, 128>}]} {
    %c0 = arith.constant 0 : index
    %c0_0 = arith.constant 0 : index
    %0 = vector.load %arg1[%c0, %c0_0] : memref<16x128xf32, #tpu.memory_space<vmem>>, vector<16x128xf32>
    %c0_1 = arith.constant 0 : index
    %c0_2 = arith.constant 0 : index
    %1 = vector.load %arg2[%c0_1, %c0_2] : memref<128x128xf32, #tpu.memory_space<vmem>>, vector<128x128xf32>
    %cst = arith.constant dense<0.000000e+00> : vector<16x128xf32>
    %2 = tpu.matmul %0, %1, %cst {dimension_numbers = #tpu.dot_dimension_numbers<[1], [1], [0], [0], [0, 0, 1, 0], [], []>} : vector<16x128xf32>, vector<128x128xf32>, vector<16x128xf32> -> vector<16x128xf32>
    %c0_3 = arith.constant 0 : index
    %c0_4 = arith.constant 0 : index
    %3 = vector.load %arg3[%c0_3, %c0_4] : memref<1x128xf32, #tpu.memory_space<vmem>>, vector<1x128xf32>
    %4 = vector.broadcast %3 : vector<1x128xf32> to vector<16x128xf32>
    %5 = arith.addf %2, %4 : vector<16x128xf32>
    %c0_5 = arith.constant 0 : index
    %c0_6 = arith.constant 0 : index
    %6 = vector.load %arg4[%c0_5, %c0_6] : memref<16x1xi32, #tpu.memory_space<vmem>>, vector<16x1xi32>
    %c0_i32 = arith.constant 0 : i32
    %7 = vector.broadcast %c0_i32 : i32 to vector<16x1xi32>
    %8 = arith.cmpi ne, %6, %7 : vector<16x1xi32>
    %cst_7 = arith.constant 0xFF800000 : f32
    %9 = vector.shape_cast %8 : vector<16x1xi1> to vector<16x1xi1>
    %10 = vector.broadcast %9 : vector<16x1xi1> to vector<16x128xi1>
    %11 = vector.broadcast %cst_7 : f32 to vector<16x128xf32>
    %12 = arith.select %10, %11, %5 : vector<16x128xi1>, vector<16x128xf32>
    %cst_8 = arith.constant dense<0xFF800000> : vector<16xf32>
    %13 = vector.multi_reduction <maximumf>, %12, %cst_8 [1] : vector<16x128xf32> to vector<16xf32>
    %14 = vector.shape_cast %13 : vector<16xf32> to vector<16x1xf32>
    %15 = vector.broadcast %14 : vector<16x1xf32> to vector<16x128xf32>
    %16 = arith.subf %12, %15 : vector<16x128xf32>
    %17 = math.exp %16 : vector<16x128xf32>
    %cst_9 = arith.constant dense<0.000000e+00> : vector<16xf32>
    %18 = vector.multi_reduction <add>, %17, %cst_9 [1] : vector<16x128xf32> to vector<16xf32>
    %19 = vector.shape_cast %18 : vector<16xf32> to vector<16x1xf32>
    %20 = tpu.reciprocal %19 {approx = true} : vector<16x1xf32> -> vector<16x1xf32>
    %21 = vector.broadcast %20 : vector<16x1xf32> to vector<16x128xf32>
    %22 = arith.mulf %17, %21 : vector<16x128xf32>
    %c0_10 = arith.constant 0 : index
    %c0_11 = arith.constant 0 : index
    %23 = vector.load %arg5[%c0_10, %c0_11] : memref<16x128xf32, #tpu.memory_space<vmem>>, vector<16x128xf32>
    tpu.vector_store %arg5[%c0_10, %c0_11], %22 {strides = array<i32>} : memref<16x128xf32, #tpu.memory_space<vmem>>, vector<16x128xf32>,
    return
  }
  func.func @transform_0(%arg0: i32) -> (i32, i32) {
    %c0_i32 = arith.constant 0 : i32
    %c0_i32_0 = arith.constant 0 : i32
    return %arg0, %c0_i32 : i32, i32
  }
  func.func @transform_1(%arg0: i32) -> (i32, i32) {
    %c0_i32 = arith.constant 0 : i32
    %c0_i32_0 = arith.constant 0 : i32
    %c0_i32_1 = arith.constant 0 : i32
    return %c0_i32, %c0_i32_0 : i32, i32
  }
  func.func @transform_2(%arg0: i32) -> (i32, i32) {
    %c0_i32 = arith.constant 0 : i32
    %c0_i32_0 = arith.constant 0 : i32
    %c0_i32_1 = arith.constant 0 : i32
    return %c0_i32, %c0_i32_0 : i32, i32
  }
  func.func @transform_3(%arg0: i32) -> (i32, i32) {
    %c0_i32 = arith.constant 0 : i32
    %c0_i32_0 = arith.constant 0 : i32
    return %arg0, %c0_i32 : i32, i32
  }
  func.func @transform_4(%arg0: i32) -> (i32, i32) {
    %c0_i32 = arith.constant 0 : i32
    %c0_i32_0 = arith.constant 0 : i32
    return %arg0, %c0_i32 : i32, i32
  }
}

</mosaic_0001>

<llo_original>
// kernel: dim_attention.1
$region0: #{dim_attention.1}
  #allocation0 [shape = 'u32[]', space=smem, size = 0x4, offset = 0x4, fixed_abs, tag = 'smem constant byte address 0x4 - core index']
  #allocation1 [shape = 'u32[144,128]{1,0:T(1,128)}', space=vmem, size = 0x12000, scoped, tag = 'internal scratch']
  %s0 = inlined_call_operand.vmem [shape: f32[16,128], index: 0, kind: input, shape index: {}]
  %s1 = inlined_call_operand.vmem [shape: f32[128,128], index: 1, kind: input, shape index: {}]
  %s2 = inlined_call_operand.vmem [shape: f32[1,128], index: 2, kind: input, shape index: {}]
  %s3 = inlined_call_operand.vmem [shape: s32[16,1], index: 3, kind: input, shape index: {}]
  %s4 = inlined_call_operand.vmem [shape: f32[16,128], index: 4, kind: output, shape index: {}]
  %s5 = sld [smem:[#allocation0]]
  $region26: #{dim_attention.1} parent=0
    _
  %s7 = ssub.s32 1, %s5
  %s8 = scalar_select 0, %s7, %s5
  // Predicated region
  $region2: #{dim_attention.1} parent=0 // pred_check
    _
  $region3: #{dim_attention.1} parent=0 // pred_check_branch
    %10 = sbr.rel (0) target = $region5
  $region4: #{dim_attention.1} parent=0 // pred_region
    _
  $region5: #{dim_attention.1} parent=0 // pred_fallthru
    _
  // Predicated region
  $region6: #{dim_attention.1} parent=0 // pred_check
    _
  $region7: #{dim_attention.1} parent=0 // pred_check_branch
    %12 = sbr.rel (0) target = $region9
  $region8: #{dim_attention.1} parent=0 // pred_region
    _
  $region9: #{dim_attention.1} parent=0 // pred_fallthru
    _
  // Predicated region
  $region10: #{dim_attention.1} parent=0 // pred_check
    _
  $region11: #{dim_attention.1} parent=0 // pred_check_branch
    %14 = sbr.rel (0) target = $region13
  $region12: #{dim_attention.1} parent=0 // pred_region
    _
  $region13: #{dim_attention.1} parent=0 // pred_fallthru
    _
  // Predicated region
  $region14: #{dim_attention.1} parent=0 // pred_check
    _
  $region15: #{dim_attention.1} parent=0 // pred_check_branch
    %16 = sbr.rel (0) target = $region17
  $region16: #{dim_attention.1} parent=0 // pred_region
    _
  $region17: #{dim_attention.1} parent=0 // pred_fallthru
    _
  %v17 = vld [vmem:[%s0] sm:$0xff]
  %v18 = vld [vmem:[%s0 + $0x8] sm:$0xff]
  %v19 = vld [vmem:[%s1] sm:$0xff]
  %v20 = vld [vmem:[%s1 + $0x8] sm:$0xff]
  %v21 = vld [vmem:[%s1 + $0x10] sm:$0xff]
  %v22 = vld [vmem:[%s1 + $0x18] sm:$0xff]
  %v23 = vld [vmem:[%s1 + $0x20] sm:$0xff]
  %v24 = vld [vmem:[%s1 + $0x28] sm:$0xff]
  %v25 = vld [vmem:[%s1 + $0x30] sm:$0xff]
  %v26 = vld [vmem:[%s1 + $0x38] sm:$0xff]
  %v27 = vld [vmem:[%s1 + $0x40] sm:$0xff]
  %v28 = vld [vmem:[%s1 + $0x48] sm:$0xff]
  %v29 = vld [vmem:[%s1 + $0x50] sm:$0xff]
  %v30 = vld [vmem:[%s1 + $0x58] sm:$0xff]
  %v31 = vld [vmem:[%s1 + $0x60] sm:$0xff]
  %v32 = vld [vmem:[%s1 + $0x68] sm:$0xff]
  %v33 = vld [vmem:[%s1 + $0x70] sm:$0xff]
  %v34 = vld [vmem:[%s1 + $0x78] sm:$0xff]
  %v35 = vld [vmem:[%s2] sm:$0x1]
  %v37 = vlaneseq
  %v38 = vshrl.u32 %v37, 7
  %v39 = vsub.s32 0, %v38
  %v40 = vrot.slane %v35, %v39
  %42 = vmatprep.subr.mxu0 0.0
  %43 = vmatpush1.xpose.msra.mxu0 %v34
  %44 = vmatprep.subr.mxu0 0.0
  %45 = vmatpush1.xpose.msra.mxu0 %v33
  %46 = vmatprep.subr.mxu0 0.0
  %47 = vmatpush1.xpose.msra.mxu0 %v32
  %48 = vmatprep.subr.mxu0 0.0
  %49 = vmatpush1.xpose.msra.mxu0 %v31
  %50 = vmatprep.subr.mxu0 0.0
  %51 = vmatpush1.xpose.msra.mxu0 %v30
  %52 = vmatprep.subr.mxu0 0.0
  %53 = vmatpush1.xpose.msra.mxu0 %v29
  %54 = vmatprep.subr.mxu0 0.0
  %55 = vmatpush1.xpose.msra.mxu0 %v28
  %56 = vmatprep.subr.mxu0 0.0
  %57 = vmatpush1.xpose.msra.mxu0 %v27
  %58 = vmatprep.subr.mxu0 0.0
  %59 = vmatpush1.xpose.msra.mxu0 %v26
  %60 = vmatprep.subr.mxu0 0.0
  %61 = vmatpush1.xpose.msra.mxu0 %v25
  %62 = vmatprep.subr.mxu0 0.0
  %63 = vmatpush1.xpose.msra.mxu0 %v24
  %64 = vmatprep.subr.mxu0 0.0
  %65 = vmatpush1.xpose.msra.mxu0 %v23
  %66 = vmatprep.subr.mxu0 0.0
  %67 = vmatpush1.xpose.msra.mxu0 %v22
  %68 = vmatprep.subr.mxu0 0.0
  %69 = vmatpush1.xpose.msra.mxu0 %v21
  %70 = vmatprep.subr.mxu0 0.0
  %71 = vmatpush1.xpose.msra.mxu0 %v20
  %72 = vmatprep.subr.mxu0 0.0
  %73 = vmatpush1.xpose.msra.mxu0 %v19
  %74 = vmatprep.subr.mxu0 0.0
  %75 = vmatpush2.xpose.msra.mxu0 0.0
  %76 = vmatprep.subr.mxu0 0.0
  %77 = vmatpush2.xpose.msra.mxu0 0.0
  %78 = vmatprep.subr.mxu0 0.0
  %79 = vmatpush2.xpose.msra.mxu0 0.0
  %80 = vmatprep.subr.mxu0 0.0
  %81 = vmatpush2.xpose.msra.mxu0 0.0
  %82 = vmatprep.subr.mxu0 0.0
  %83 = vmatpush2.xpose.msra.mxu0 0.0
  %84 = vmatprep.subr.mxu0 0.0
  %85 = vmatpush2.xpose.msra.mxu0 0.0
  %86 = vmatprep.subr.mxu0 0.0
  %87 = vmatpush2.xpose.msra.mxu0 0.0
  %88 = vmatprep.subr.mxu0 0.0
  %89 = vmatpush2.xpose.msra.mxu0 0.0
  %90 = vmatprep.subr.mxu0 0.0
  %91 = vmatpush2.xpose.msra.mxu0 0.0
  %92 = vmatprep.subr.mxu0 0.0
  %93 = vmatpush2.xpose.msra.mxu0 0.0
  %94 = vmatprep.subr.mxu0 0.0
  %95 = vmatpush2.xpose.msra.mxu0 0.0
  %96 = vmatprep.subr.mxu0 0.0
  %97 = vmatpush2.xpose.msra.mxu0 0.0
  %98 = vmatprep.subr.mxu0 0.0
  %99 = vmatpush2.xpose.msra.mxu0 0.0
  %100 = vmatprep.subr.mxu0 0.0
  %101 = vmatpush2.xpose.msra.mxu0 0.0
  %102 = vmatprep.subr.mxu0 0.0
  %103 = vmatpush2.xpose.msra.mxu0 0.0
  %104 = vmatprep.subr.mxu0 0.0
  %105 = vmatpush2.xpose.msra.mxu0 0.0
  %106 = vmatprep.mubr.f32.mxu0 0.0
  %107 = vmatmul.mubr.f32.gmra.mxu0 %v17
  %v108 = vpop.f32.mrf.mxu0
  %v109 = vadd.f32 %v40, %v108
  %v110 = vpop.f32.mrf.mxu0
  %111 = vmatprep.mubr.f32.mxu0 0.0
  %112 = vmatmul.mubr.f32.gmra.mxu0 %v18
  %v113 = vpop.f32.mrf.mxu0
  %v114 = vadd.f32 %v40, %v113
  %v115 = vpop.f32.mrf.mxu0
  %116 = vdwg.mxu0
  %v117 = vld [vmem:[%s3] sm:$0xff]
  %v118 = vld [vmem:[%s3 + $0x8] sm:$0xff]
  %vm119 = vcmp.ne.s32.totalorder %v117, 0
  %vm120 = vcmp.ne.s32.totalorder %v118, 0
  %v121 = vsel %vm119, 1, 0
  %v122 = vsel %vm120, 1, 0
  %123 = vset.pattern.permute.xlu0 0
  %124 = vperm.xlu0 %123, %v121
  %v125 = vpop.permute.xlu0 %124
  %126 = vset.pattern.permute.xlu0 0
  %127 = vperm.xlu0 %126, %v122
  %v128 = vpop.permute.xlu0 %127
  %vm129 = vcmp.eq.s32.totalorder %v125, 1
  %vm130 = vcmp.eq.s32.totalorder %v128, 1
  %v131 = vsel %vm129, -inf, %v109
  %v132 = vsel %vm130, -inf, %v114
  %133 = vmax.xlane.f32.xlu0 %v131
  %v134 = vpop.xlane.xlu0 %133
  %135 = vmax.xlane.f32.xlu0 %v132
  %v136 = vpop.xlane.xlu0 %135
  %v137 = vsub.f32 %v131, %v134
  %v138 = vsub.f32 %v132, %v136
  %v139 = vmul.f32 %v137, 1.442695
  %v140 = vpow.pop %v139
  %v141 = vmul.f32 %v138, 1.442695
  %v142 = vpow.pop %v141
  %143 = vadd.xlane.f32.xlu0 %v140
  %v144 = vpop.xlane.xlu0 %143
  %145 = vadd.xlane.f32.xlu0 %v142
  %v146 = vpop.xlane.xlu0 %145
  %v147 = vrcp.pop %v144
  %v148 = vrcp.pop %v146
  %v149 = vmul.f32 %v140, %v147
  %v150 = vmul.f32 %v142, %v148
  %151 = vst [vmem:[%s4] sm:$0xff] %v149
  %152 = vst [vmem:[%s4 + $0x8] sm:$0xff] %v150
  // Predicated region
  $region18: #{dim_attention.1} parent=0 // pred_check
    _
  $region19: #{dim_attention.1} parent=0 // pred_check_branch
    %154 = sbr.rel (0) target = $region21
  $region20: #{dim_attention.1} parent=0 // pred_region
    _
  $region21: #{dim_attention.1} parent=0 // pred_fallthru
    _
  // Predicated region
  $region22: #{dim_attention.1} parent=0 // pred_check
    _
  $region23: #{dim_attention.1} parent=0 // pred_check_branch
    %156 = sbr.rel (0) target = $region25
  $region24: #{dim_attention.1} parent=0 // pred_region
    _
  $region25: #{dim_attention.1} parent=0 // pred_fallthru
    _

</llo_original>
